<compile_context>
chip_gen: v7x
topology: tpu7x:2x2x1
jax: 0.10.0
libtpu: 0.0.40
codegen_flags: <defaults>
</compile_context>

<pallas_src>
import math

import jax
import jax.numpy as jnp
from jax.experimental import pallas as pl
from jax.experimental.pallas import tpu as pltpu


def _compgcn_kernel(hs_ref, a_ref, hm_ref, corr_ref, norm_ref, w_ref, b_ref,
                    out_ref, acc_ref):
    k = pl.program_id(1)

    @pl.when(k == 0)
    def _init():
        acc_ref[...] = jnp.zeros_like(acc_ref)

    # Neighbor aggregation of pre-projected messages: acc += A_tile @ hm_tile.
    acc_ref[...] += jnp.dot(a_ref[...], hm_ref[...],
                            preferred_element_type=jnp.float32)

    @pl.when(k == pl.num_programs(1) - 1)
    def _finalize():
        # Self projection (hs_tile @ W), fused with the f32 epilogue.
        self_term = jnp.dot(hs_ref[...], w_ref[...],
                            preferred_element_type=jnp.float32)
        agg = (acc_ref[...] - corr_ref[...]) * norm_ref[...]
        out = self_term + agg + b_ref[...]
        out_ref[...] = jnp.maximum(out, 0.0).astype(out_ref.dtype)   # ReLU


def _round_up(x, m):
    return ((x + m - 1) // m) * m


def compgcn_forward(h, norm, adj, ecnt, r, w_msg, w, bias, *,
                    tile_n=256, tile_k=512, use_bf16=False):
    n, din = h.shape
    dout = w.shape[1]
    f32 = jnp.float32
    mm_dtype = jnp.bfloat16 if use_bf16 else f32

    # ---- one-time precomputation (hoisted out of the per-tile grid loop) ----
    hs = h.astype(f32) * norm.astype(f32)              # [N, Din]
    hm = jnp.dot(hs, w_msg.astype(f32))                # [N, Dout]  hs @ W_msg
    rm = jnp.dot(r.astype(f32), w_msg.astype(f32))     # [R, Dout]  r  @ W_msg
    corr = jnp.dot(ecnt.astype(f32), rm)               # [N, Dout]  Ecnt @ rm

    # ---- tiling / padding (tiles aligned to (8, 128)) ----
    tn = min(tile_n, _round_up(n, 8))
    tk = min(tile_k, _round_up(n, 128))
    np_rows = _round_up(n, tn)
    np_cols = _round_up(n, tk)

    def pad_rows(x, rows):
        return jnp.pad(x, ((0, rows - x.shape[0]), (0, 0)))

    hs_p = pad_rows(hs, np_rows)
    corr_p = pad_rows(corr, np_rows)
    norm_p = pad_rows(norm.astype(f32), np_rows)
    hm_p = pad_rows(hm, np_cols)
    adj_p = jnp.pad(adj.astype(f32),
                    ((0, np_rows - n), (0, np_cols - n)))

    # MXU operands (optionally bf16); elementwise epilogue stays f32.
    hs_mm = hs_p.astype(mm_dtype)
    hm_mm = hm_p.astype(mm_dtype)
    adj_mm = adj_p.astype(mm_dtype)
    w_mm = w.astype(mm_dtype)
    bias2d = bias.reshape(1, dout).astype(f32)

    grid = (np_rows // tn, np_cols // tk)

    # VMEM budget: double-buffered pipeline blocks + f32 accumulator scratch.
    mm_b = 2 if use_bf16 else 4
    est = (2 * (tn * din * mm_b          # hs tile
                + tn * tk * mm_b         # A tile
                + tk * dout * mm_b       # hm tile
                + tn * dout * 4          # corr tile
                + tn * 4                 # norm tile
                + tn * dout * 4          # out tile
                + din * dout * mm_b      # W
                + dout * 4)              # bias
           + tn * dout * 4)              # acc scratch
    vmem_limit = int(min(64 * 1024 * 1024, max(32 * 1024 * 1024, 2 * est)))

    out = pl.pallas_call(
        _compgcn_kernel,
        out_shape=jax.ShapeDtypeStruct((np_rows, dout), f32),
        grid_spec=pltpu.PrefetchScalarGridSpec(
            num_scalar_prefetch=0,
            grid=grid,
            in_specs=[
                pl.BlockSpec((tn, din), lambda i, k: (i, 0)),    # hs row tile
                pl.BlockSpec((tn, tk), lambda i, k: (i, k)),     # A row x col
                pl.BlockSpec((tk, dout), lambda i, k: (k, 0)),   # hm col tile
                pl.BlockSpec((tn, dout), lambda i, k: (i, 0)),   # corr row tile
                pl.BlockSpec((tn, 1), lambda i, k: (i, 0)),      # norm row tile
                pl.BlockSpec((din, dout), lambda i, k: (0, 0)),  # W (invariant)
                pl.BlockSpec((1, dout), lambda i, k: (0, 0)),    # bias
            ],
            out_specs=pl.BlockSpec((tn, dout), lambda i, k: (i, 0)),
            scratch_shapes=[pltpu.VMEM((tn, dout), jnp.float32)],
        ),
        compiler_params=pltpu.CompilerParams(
            dimension_semantics=("parallel", "arbitrary"),
            vmem_limit_bytes=vmem_limit,
        ),
    )(hs_mm, adj_mm, hm_mm, corr_p, norm_p, w_mm, bias2d)

    return out[:n]


def reference_forward(h, norm, adj, ecnt, r, w_msg, w, bias):
    hs = h * norm
    agg = (jnp.dot(adj, hs) - jnp.dot(ecnt, r)) @ w_msg
    return jnp.maximum(hs @ w + agg * norm + bias.reshape(1, -1), 0.0)


if __name__ == "__main__":
    key = jax.random.PRNGKey(0)

    N, R = 200, 8                       # nodes, relation types
    IN_FEATS, OUT_FEATS = 128, 128      # lane-dense feature dims

    # ---- deterministic synthetic graph (two rings) ----
    src1 = jnp.arange(N, dtype=jnp.int32)
    dst1 = (src1 + 1) % N
    src2 = jnp.arange(N, dtype=jnp.int32)
    dst2 = (src2 + 5) % N
    src = jnp.concatenate([src1, src2])
    dst = jnp.concatenate([dst1, dst2])
    rel = (src + dst) % R

    adj = jnp.zeros((N, N), jnp.float32).at[dst, src].add(1.0)
    ecnt = jnp.zeros((N, R), jnp.float32).at[dst, rel].add(1.0)

    in_deg = adj.sum(axis=1, keepdims=True)
    norm = 1.0 / jnp.maximum(in_deg, 1.0)            # g.ndata['norm']

    # ---- deterministic parameter init (matches reset_parameters dist) ----
    stdv = 1.0 / math.sqrt(OUT_FEATS)
    k_h, k_r, k_wm, k_w, k_b = jax.random.split(key, 5)
    h = jax.random.normal(k_h, (N, IN_FEATS), jnp.float32)
    r = jax.random.normal(k_r, (R, IN_FEATS), jnp.float32)
    w_msg = jax.random.uniform(k_wm, (IN_FEATS, OUT_FEATS), jnp.float32,
                               minval=-stdv, maxval=stdv)
    w = jax.random.uniform(k_w, (IN_FEATS, OUT_FEATS), jnp.float32,
                           minval=-stdv, maxval=stdv)
    bias = jax.random.uniform(k_b, (OUT_FEATS,), jnp.float32,
                              minval=-stdv, maxval=stdv)

    ref = reference_forward(h, norm, adj, ecnt, r, w_msg, w, bias)

    # f32 path with 128x128 tiles -> 2x2 grid, exercises both the parallel row
    # axis and the column-reduction accumulation (with row padding 200 -> 256).
    out_f32 = compgcn_forward(h, norm, adj, ecnt, r, w_msg, w, bias,
                              tile_n=128, tile_k=128, use_bf16=False)
    out_f32 = jax.block_until_ready(out_f32)
    assert out_f32.shape == (N, OUT_FEATS)
    assert jnp.allclose(out_f32, ref, rtol=1e-4, atol=1e-4), "f32 mismatch"

    # bf16 MXU-operand path (f32 accumulation / f32 epilogue), default tiles
    # -> single (1,1) grid step, whole problem resident in VMEM.
    out_bf16 = compgcn_forward(h, norm, adj, ecnt, r, w_msg, w, bias,
                               use_bf16=True)
    out_bf16 = jax.block_until_ready(out_bf16)
    assert out_bf16.shape == (N, OUT_FEATS)
    assert jnp.allclose(out_bf16, ref, rtol=5e-2, atol=5e-2), "bf16 mismatch"

    print("KERNEL_OK")
</pallas_src>

<mosaic_0001>
module attributes {stable_mosaic.version = 11 : i64} {
  func.func @_compgcn_kernel(%arg0: i32, %arg1: i32, %arg2: memref<128x128xf32, #tpu.memory_space<vmem>>, %arg3: memref<128x128xf32, #tpu.memory_space<vmem>>, %arg4: memref<128x128xf32, #tpu.memory_space<vmem>>, %arg5: memref<128x128xf32, #tpu.memory_space<vmem>>, %arg6: memref<128x1xf32, #tpu.memory_space<vmem>>, %arg7: memref<128x128xf32, #tpu.memory_space<vmem>>, %arg8: memref<1x128xf32, #tpu.memory_space<vmem>>, %arg9: memref<128x128xf32, #tpu.memory_space<vmem>>, %arg10: memref<128x128xf32, #tpu.memory_space<vmem>>) attributes {dimension_semantics = [#tpu.dimension_semantics<parallel>, #tpu.dimension_semantics<arbitrary>], iteration_bounds = array<i64: 2, 2>, scalar_prefetch = 0 : i64, scratch_operands = 1 : i64, tpu.core_type = #tpu.core_type<tc>, window_params = [{transform_indices = @transform_0, window_bounds = array<i64: 128, 128>}, {transform_indices = @transform_1, window_bounds = array<i64: 128, 128>}, {transform_indices = @transform_2, window_bounds = array<i64: 128, 128>}, {transform_indices = @transform_3, window_bounds = array<i64: 128, 128>}, {transform_indices = @transform_4, window_bounds = array<i64: 128, 1>}, {pipeline_mode = #tpu.pipeline_mode<synchronous>, transform_indices = @transform_5, window_bounds = array<i64: 128, 128>}, {pipeline_mode = #tpu.pipeline_mode<synchronous>, transform_indices = @transform_6, window_bounds = array<i64: 1, 128>}, {transform_indices = @transform_7, window_bounds = array<i64: 128, 128>}]} {
    %c0_i32 = arith.constant 0 : i32
    %0 = arith.cmpi eq, %arg1, %c0_i32 : i32
    %1 = arith.extui %0 : i1 to i32
    %c0_i32_0 = arith.constant 0 : i32
    %2 = arith.cmpi ne, %1, %c0_i32_0 : i32
    scf.if %2 {
      %cst_9 = arith.constant 0.000000e+00 : f32
      %12 = vector.broadcast %cst_9 : f32 to vector<128x128xf32>
      %c0_10 = arith.constant 0 : index
      %c0_11 = arith.constant 0 : index
      %13 = vector.load %arg10[%c0_10, %c0_11] : memref<128x128xf32, #tpu.memory_space<vmem>>, vector<128x128xf32>
      tpu.vector_store %arg10[%c0_10, %c0_11], %12 {strides = array<i32>} : memref<128x128xf32, #tpu.memory_space<vmem>>, vector<128x128xf32>,
    } else {
    }
    %c0 = arith.constant 0 : index
    %c0_1 = arith.constant 0 : index
    %3 = vector.load %arg10[%c0, %c0_1] : memref<128x128xf32, #tpu.memory_space<vmem>>, vector<128x128xf32>
    %c0_2 = arith.constant 0 : index
    %c0_3 = arith.constant 0 : index
    %4 = vector.load %arg3[%c0_2, %c0_3] : memref<128x128xf32, #tpu.memory_space<vmem>>, vector<128x128xf32>
    %c0_4 = arith.constant 0 : index
    %c0_5 = arith.constant 0 : index
    %5 = vector.load %arg4[%c0_4, %c0_5] : memref<128x128xf32, #tpu.memory_space<vmem>>, vector<128x128xf32>
    %cst = arith.constant dense<0.000000e+00> : vector<128x128xf32>
    %6 = tpu.matmul %4, %5, %cst {dimension_numbers = #tpu.dot_dimension_numbers<[1], [0], [0], [1], [0, 0, 1, 1], [], []>} : vector<128x128xf32>, vector<128x128xf32>, vector<128x128xf32> -> vector<128x128xf32>
    %7 = arith.addf %3, %6 : vector<128x128xf32>
    %c0_6 = arith.constant 0 : index
    %c0_7 = arith.constant 0 : index
    %8 = vector.load %arg10[%c0_6, %c0_7] : memref<128x128xf32, #tpu.memory_space<vmem>>, vector<128x128xf32>
    tpu.vector_store %arg10[%c0_6, %c0_7], %7 {strides = array<i32>} : memref<128x128xf32, #tpu.memory_space<vmem>>, vector<128x128xf32>,
    %c1_i32 = arith.constant 1 : i32
    %9 = arith.cmpi eq, %arg1, %c1_i32 : i32
    %10 = arith.extui %9 : i1 to i32
    %c0_i32_8 = arith.constant 0 : i32
    %11 = arith.cmpi ne, %10, %c0_i32_8 : i32
    scf.if %11 {
      %c0_9 = arith.constant 0 : index
      %c0_10 = arith.constant 0 : index
      %12 = vector.load %arg2[%c0_9, %c0_10] : memref<128x128xf32, #tpu.memory_space<vmem>>, vector<128x128xf32>
      %c0_11 = arith.constant 0 : index
      %c0_12 = arith.constant 0 : index
      %13 = vector.load %arg7[%c0_11, %c0_12] : memref<128x128xf32, #tpu.memory_space<vmem>>, vector<128x128xf32>
      %cst_13 = arith.constant dense<0.000000e+00> : vector<128x128xf32>
      %14 = tpu.matmul %12, %13, %cst_13 {dimension_numbers = #tpu.dot_dimension_numbers<[1], [0], [0], [1], [0, 0, 1, 1], [], []>} : vector<128x128xf32>, vector<128x128xf32>, vector<128x128xf32> -> vector<128x128xf32>
      %c0_14 = arith.constant 0 : index
      %c0_15 = arith.constant 0 : index
      %15 = vector.load %arg10[%c0_14, %c0_15] : memref<128x128xf32, #tpu.memory_space<vmem>>, vector<128x128xf32>
      %c0_16 = arith.constant 0 : index
      %c0_17 = arith.constant 0 : index
      %16 = vector.load %arg5[%c0_16, %c0_17] : memref<128x128xf32, #tpu.memory_space<vmem>>, vector<128x128xf32>
      %17 = arith.subf %15, %16 : vector<128x128xf32>
      %c0_18 = arith.constant 0 : index
      %c0_19 = arith.constant 0 : index
      %18 = vector.load %arg6[%c0_18, %c0_19] : memref<128x1xf32, #tpu.memory_space<vmem>>, vector<128x1xf32>
      %19 = vector.broadcast %18 : vector<128x1xf32> to vector<128x128xf32>
      %20 = arith.mulf %17, %19 : vector<128x128xf32>
      %21 = arith.addf %14, %20 : vector<128x128xf32>
      %c0_20 = arith.constant 0 : index
      %c0_21 = arith.constant 0 : index
      %22 = vector.load %arg8[%c0_20, %c0_21] : memref<1x128xf32, #tpu.memory_space<vmem>>, vector<1x128xf32>
      %23 = vector.broadcast %22 : vector<1x128xf32> to vector<128x128xf32>
      %24 = arith.addf %21, %23 : vector<128x128xf32>
      %cst_22 = arith.constant 0.000000e+00 : f32
      %25 = vector.broadcast %cst_22 : f32 to vector<128x128xf32>
      %26 = arith.maximumf %24, %25 : vector<128x128xf32>
      %c0_23 = arith.constant 0 : index
      %c0_24 = arith.constant 0 : index
      %27 = vector.load %arg9[%c0_23, %c0_24] : memref<128x128xf32, #tpu.memory_space<vmem>>, vector<128x128xf32>
      tpu.vector_store %arg9[%c0_23, %c0_24], %26 {strides = array<i32>} : memref<128x128xf32, #tpu.memory_space<vmem>>, vector<128x128xf32>,
    } else {
    }
    return
  }
  func.func @transform_0(%arg0: i32, %arg1: i32) -> (i32, i32) {
    %c0_i32 = arith.constant 0 : i32
    %c0_i32_0 = arith.constant 0 : i32
    return %arg0, %c0_i32 : i32, i32
  }
  func.func @transform_1(%arg0: i32, %arg1: i32) -> (i32, i32) {
    %c0_i32 = arith.constant 0 : i32
    return %arg0, %arg1 : i32, i32
  }
  func.func @transform_2(%arg0: i32, %arg1: i32) -> (i32, i32) {
    %c0_i32 = arith.constant 0 : i32
    %c0_i32_0 = arith.constant 0 : i32
    return %arg1, %c0_i32 : i32, i32
  }
  func.func @transform_3(%arg0: i32, %arg1: i32) -> (i32, i32) {
    %c0_i32 = arith.constant 0 : i32
    %c0_i32_0 = arith.constant 0 : i32
    return %arg0, %c0_i32 : i32, i32
  }
  func.func @transform_4(%arg0: i32, %arg1: i32) -> (i32, i32) {
    %c0_i32 = arith.constant 0 : i32
    %c0_i32_0 = arith.constant 0 : i32
    return %arg0, %c0_i32 : i32, i32
  }
  func.func @transform_5(%arg0: i32, %arg1: i32) -> (i32, i32) {
    %c0_i32 = arith.constant 0 : i32
    %c0_i32_0 = arith.constant 0 : i32
    %c0_i32_1 = arith.constant 0 : i32
    return %c0_i32, %c0_i32_0 : i32, i32
  }
  func.func @transform_6(%arg0: i32, %arg1: i32) -> (i32, i32) {
    %c0_i32 = arith.constant 0 : i32
    %c0_i32_0 = arith.constant 0 : i32
    %c0_i32_1 = arith.constant 0 : i32
    return %c0_i32, %c0_i32_0 : i32, i32
  }
  func.func @transform_7(%arg0: i32, %arg1: i32) -> (i32, i32) {
    %c0_i32 = arith.constant 0 : i32
    %c0_i32_0 = arith.constant 0 : i32
    return %arg0, %c0_i32 : i32, i32
  }
}

</mosaic_0001>

<llo_original>
// kernel: tpu_custom_call.1
$region0: #{tpu_custom_call.1}
  #allocation0 [shape = 'u32[]', space=smem, size = 0x4, offset = 0x4, fixed_abs, tag = 'smem constant byte address 0x4 - core index']
  #allocation1 [shape = 'u32[144,128]{1,0:T(1,128)}', space=vmem, size = 0x12000, scoped, tag = 'internal scratch']
  #allocation2 [shape = 'f32[128,128]{1,0:T(8,128)}', space=vmem, size = 0x10000, scoped, tag = 'scratch operand']
  %s0 = inlined_call_operand.vmem [shape: f32[256,128], index: 0, kind: input, shape index: {}]
  %s1 = inlined_call_operand.hbm [shape: f32[256,256], index: 1, kind: input, shape index: {}]
  %s2 = inlined_call_operand.hbm [shape: f32[256,128], index: 2, kind: input, shape index: {}]
  %s3 = inlined_call_operand.hbm [shape: f32[256,128], index: 3, kind: input, shape index: {}]
  %s4 = inlined_call_operand.vmem [shape: f32[256,1], index: 4, kind: input, shape index: {}]
  %s5 = inlined_call_operand.hbm [shape: f32[128,128], index: 5, kind: input, shape index: {}]
  %s6 = inlined_call_operand.vmem [shape: f32[1,128], index: 6, kind: input, shape index: {}]
  %s7 = inlined_call_operand.hbm [shape: f32[256,128], index: 7, kind: output, shape index: {}]
  %s8 = sld [smem:[#allocation0]]
  $region85: #{tpu_custom_call.1} parent=0
    _
  %s10 = ssub.s32 1, %s8
  %s11 = scalar_select 0, %s10, %s8
  $region1: #{tpu_custom_call.1} parent=0
    #allocation3 [shape = 'u8[131072]{0}', space=vmem, size = 0x20000, scoped, tag = 'input window, operand 1']
    #allocation4 [shape = 's32[2]{0}', space=sflag, size = 0x8, scoped, tag = 'scoped memory for tpu_custom_call.1']
    #allocation5 [shape = 's32[2]{0}', space=sflag, size = 0x8, scoped, tag = 'scoped memory for tpu_custom_call.1']
    #allocation6 [shape = 'u8[131072]{0}', space=vmem, size = 0x20000, scoped, tag = 'input window, operand 2']
    #allocation7 [shape = 's32[2]{0}', space=sflag, size = 0x8, scoped, tag = 'scoped memory for tpu_custom_call.1']
    #allocation8 [shape = 'u8[131072]{0}', space=vmem, size = 0x20000, scoped, tag = 'input window, operand 3']
    #allocation9 [shape = 'u8[65536]{0}', space=vmem, size = 0x10000, scoped, tag = 'input window, operand 5, single buffered']
    #allocation10 [shape = 's32[1]{0}', space=sflag, size = 0x4, scoped, tag = 'scoped memory for tpu_custom_call.1']
    #allocation11 [shape = 'u8[131072]{0}', space=vmem, size = 0x20000, scoped, tag = 'output window, operand 0']
    %12 = vsyncpa [#allocation4], 0
    %s13 = scalar_lea.sflag [#allocation4], 1
    %14 = vsyncpa %s13, 0
    %15 = vsyncpa [#allocation7], 0
    %s16 = scalar_lea.sflag [#allocation7], 1
    %17 = vsyncpa %s16, 0
    %18 = vsyncpa [#allocation10], 0
    %19 = vsyncpa [#allocation5], 0
    %s20 = scalar_lea.sflag [#allocation5], 1
    %21 = vsyncpa %s20, 0
    loop: start=0, step=1, limit=6
    $region2: #{tpu_custom_call.1} parent=1 // loop_pre_header
      _
    $region3: #{tpu_custom_call.1} parent=1 // loop_header
      %s23 = sphi 0, %s27
      %p24 = scmp.ge.s32.totalorder %s23, 6
      %s30 = sphi 0, %s42
      %s31 = sphi 0, %s38
      %s32 = sphi 0, %s30
      %s33 = sphi 0, %s31
      %s34 = sphi 0, %s32
      %s35 = sphi 0, %s33
      %s45 = sphi 0, %s47
      %s48 = sphi 0, %s45
      %s49 = sphi 0, %s48
      %s65 = sphi 0, %s49
      %s73 = sphi 0, %s75
      %s76 = sphi 0, %s73
      %s77 = sphi 0, %s76
      %s93 = sphi 0, %s77
      %s99 = sphi 0, %s101
      %s102 = sphi 0, %s99
      %s103 = sphi 0, %s102
      %s119 = sphi 0, %s103
      %s125 = sphi 0, %s127
      %s128 = sphi 0, %s125
      %s129 = sphi 0, %s128
      %s145 = sphi 0, %s129
      %s151 = sphi 0, %s153
      %s154 = sphi 0, %s151
      %s155 = sphi 0, %s154
      %s171 = sphi 0, %s155
      %s175 = sphi 0, %s175
      %s177 = sphi 0, %s175
      %s178 = sphi 0, %s177
      %s192 = sphi 0, %s178
      %s196 = sphi 0, %s196
      %s198 = sphi 0, %s196
      %s199 = sphi 0, %s198
      %s213 = sphi 0, %s199
      %s219 = sphi 0, %s221
      %s222 = sphi 0, %s219
      %s223 = sphi 0, %s222
      %s239 = sphi 0, %s223
    $region4: #{tpu_custom_call.1} parent=1 // loop_header_branch
      %26 = sbr.rel (%p24) target = $region8
    $region5: #{tpu_custom_call.1} parent=1 // loop_body
      %s28 = ssub.s32 %s23, 1
      %s29 = ssub.s32 %s23, 2
      %s36 = sadd.s32 1, %s31
      %p37 = scmp.ge.s32.totalorder %s36, 2
      %s38 = scalar_select %p37, 0, %s36
      %s39 = sadd.s32 1, %s30
      %s40 = scalar_select %p37, %s39, %s30
      %p41 = scmp.ge.s32.totalorder %s40, 2
      %s42 = scalar_select %p41, 0, %s40
      %s43 = ssub.s32 %s30, %s42
      %p44 = scmp.eq.s32.totalorder %s43, 0
      %s46 = sadd.s32 %s45, 1
      %s47 = scalar_select %p44, %s45, %s46
      %p50 = pneg %p44
      %p51 = scmp.eq.s32.totalorder %s23, 3
      %p52 = por %p50, %p51
      %p53 = scmp.ne.s32.totalorder %s45, %s48
      %p54 = scmp.eq.s32.totalorder %s23, 0
      %p55 = por %p53, %p54
      %p56 = scmp.ne.s32.totalorder %s45, %s48
      %p57 = scmp.eq.s32.totalorder %s28, 3
      %p58 = por %p56, %p57
      %p59 = scmp.ne.s32.totalorder %s48, %s49
      %p60 = scmp.eq.s32.totalorder %s28, 0
      %p61 = por %p59, %p60
      %p62 = scmp.ne.s32.totalorder %s48, %s49
      %p63 = scmp.eq.s32.totalorder %s29, 3
      %p64 = por %p62, %p63
      %p66 = scmp.ne.s32.totalorder %s49, %s65
      %p67 = scmp.eq.s32.totalorder %s29, 0
      %p68 = por %p66, %p67
      %s69 = ssub.s32 %s30, %s42
      %s70 = ssub.s32 %s31, %s38
      %s71 = sor.u32 %s69, %s70
      %p72 = scmp.eq.s32.totalorder %s71, 0
      %s74 = sadd.s32 %s73, 1
      %s75 = scalar_select %p72, %s73, %s74
      %p78 = pneg %p72
      %p79 = scmp.eq.s32.totalorder %s23, 3
      %p80 = por %p78, %p79
      %p81 = scmp.ne.s32.totalorder %s73, %s76
      %p82 = scmp.eq.s32.totalorder %s23, 0
      %p83 = por %p81, %p82
      %p84 = scmp.ne.s32.totalorder %s73, %s76
      %p85 = scmp.eq.s32.totalorder %s28, 3
      %p86 = por %p84, %p85
      %p87 = scmp.ne.s32.totalorder %s76, %s77
      %p88 = scmp.eq.s32.totalorder %s28, 0
      %p89 = por %p87, %p88
      %p90 = scmp.ne.s32.totalorder %s76, %s77
      %p91 = scmp.eq.s32.totalorder %s29, 3
      %p92 = por %p90, %p91
      %p94 = scmp.ne.s32.totalorder %s77, %s93
      %p95 = scmp.eq.s32.totalorder %s29, 0
      %p96 = por %p94, %p95
      %s97 = ssub.s32 %s31, %s38
      %p98 = scmp.eq.s32.totalorder %s97, 0
      %s100 = sadd.s32 %s99, 1
      %s101 = scalar_select %p98, %s99, %s100
      %p104 = pneg %p98
      %p105 = scmp.eq.s32.totalorder %s23, 3
      %p106 = por %p104, %p105
      %p107 = scmp.ne.s32.totalorder %s99, %s102
      %p108 = scmp.eq.s32.totalorder %s23, 0
      %p109 = por %p107, %p108
      %p110 = scmp.ne.s32.totalorder %s99, %s102
      %p111 = scmp.eq.s32.totalorder %s28, 3
      %p112 = por %p110, %p111
      %p113 = scmp.ne.s32.totalorder %s102, %s103
      %p114 = scmp.eq.s32.totalorder %s28, 0
      %p115 = por %p113, %p114
      %p116 = scmp.ne.s32.totalorder %s102, %s103
      %p117 = scmp.eq.s32.totalorder %s29, 3
      %p118 = por %p116, %p117
      %p120 = scmp.ne.s32.totalorder %s103, %s119
      %p121 = scmp.eq.s32.totalorder %s29, 0
      %p122 = por %p120, %p121
      %s123 = ssub.s32 %s30, %s42
      %p124 = scmp.eq.s32.totalorder %s123, 0
      %s126 = sadd.s32 %s125, 1
      %s127 = scalar_select %p124, %s125, %s126
      %p130 = pneg %p124
      %p131 = scmp.eq.s32.totalorder %s23, 3
      %p132 = por %p130, %p131
      %p133 = scmp.ne.s32.totalorder %s125, %s128
      %p134 = scmp.eq.s32.totalorder %s23, 0
      %p135 = por %p133, %p134
      %p136 = scmp.ne.s32.totalorder %s125, %s128
      %p137 = scmp.eq.s32.totalorder %s28, 3
      %p138 = por %p136, %p137
      %p139 = scmp.ne.s32.totalorder %s128, %s129
      %p140 = scmp.eq.s32.totalorder %s28, 0
      %p141 = por %p139, %p140
      %p142 = scmp.ne.s32.totalorder %s128, %s129
      %p143 = scmp.eq.s32.totalorder %s29, 3
      %p144 = por %p142, %p143
      %p146 = scmp.ne.s32.totalorder %s129, %s145
      %p147 = scmp.eq.s32.totalorder %s29, 0
      %p148 = por %p146, %p147
      %s149 = ssub.s32 %s30, %s42
      %p150 = scmp.eq.s32.totalorder %s149, 0
      %s152 = sadd.s32 %s151, 1
      %s153 = scalar_select %p150, %s151, %s152
      %p156 = pneg %p150
      %p157 = scmp.eq.s32.totalorder %s23, 3
      %p158 = por %p156, %p157
      %p159 = scmp.ne.s32.totalorder %s151, %s154
      %p160 = scmp.eq.s32.totalorder %s23, 0
      %p161 = por %p159, %p160
      %p162 = scmp.ne.s32.totalorder %s151, %s154
      %p163 = scmp.eq.s32.totalorder %s28, 3
      %p164 = por %p162, %p163
      %p165 = scmp.ne.s32.totalorder %s154, %s155
      %p166 = scmp.eq.s32.totalorder %s28, 0
      %p167 = por %p165, %p166
      %p168 = scmp.ne.s32.totalorder %s154, %s155
      %p169 = scmp.eq.s32.totalorder %s29, 3
      %p170 = por %p168, %p169
      %p172 = scmp.ne.s32.totalorder %s155, %s171
      %p173 = scmp.eq.s32.totalorder %s29, 0
      %p174 = por %p172, %p173
      %s176 = sadd.s32 %s175, 1
      %p179 = scmp.eq.s32.totalorder %s23, 3
      %p180 = scmp.ne.s32.totalorder %s175, %s177
      %p181 = scmp.eq.s32.totalorder %s23, 0
      %p182 = por %p180, %p181
      %p183 = scmp.ne.s32.totalorder %s175, %s177
      %p184 = scmp.eq.s32.totalorder %s28, 3
      %p185 = por %p183, %p184
      %p186 = scmp.ne.s32.totalorder %s177, %s178
      %p187 = scmp.eq.s32.totalorder %s28, 0
      %p188 = por %p186, %p187
      %p189 = scmp.ne.s32.totalorder %s177, %s178
      %p190 = scmp.eq.s32.totalorder %s29, 3
      %p191 = por %p189, %p190
      %p193 = scmp.ne.s32.totalorder %s178, %s192
      %p194 = scmp.eq.s32.totalorder %s29, 0
      %p195 = por %p193, %p194
      %s197 = sadd.s32 %s196, 1
      %p200 = scmp.eq.s32.totalorder %s23, 3
      %p201 = scmp.ne.s32.totalorder %s196, %s198
      %p202 = scmp.eq.s32.totalorder %s23, 0
      %p203 = por %p201, %p202
      %p204 = scmp.ne.s32.totalorder %s196, %s198
      %p205 = scmp.eq.s32.totalorder %s28, 3
      %p206 = por %p204, %p205
      %p207 = scmp.ne.s32.totalorder %s198, %s199
      %p208 = scmp.eq.s32.totalorder %s28, 0
      %p209 = por %p207, %p208
      %p210 = scmp.ne.s32.totalorder %s198, %s199
      %p211 = scmp.eq.s32.totalorder %s29, 3
      %p212 = por %p210, %p211
      %p214 = scmp.ne.s32.totalorder %s199, %s213
      %p215 = scmp.eq.s32.totalorder %s29, 0
      %p216 = por %p214, %p215
      %s217 = ssub.s32 %s30, %s42
      %p218 = scmp.eq.s32.totalorder %s217, 0
      %s220 = sadd.s32 %s219, 1
      %s221 = scalar_select %p218, %s219, %s220
      %p224 = pneg %p218
      %p225 = scmp.eq.s32.totalorder %s23, 3
      %p226 = por %p224, %p225
      %p227 = scmp.ne.s32.totalorder %s219, %s222
      %p228 = scmp.eq.s32.totalorder %s23, 0
      %p229 = por %p227, %p228
      %p230 = scmp.ne.s32.totalorder %s219, %s222
      %p231 = scmp.eq.s32.totalorder %s28, 3
      %p232 = por %p230, %p231
      %p233 = scmp.ne.s32.totalorder %s222, %s223
      %p234 = scmp.eq.s32.totalorder %s28, 0
      %p235 = por %p233, %p234
      %p236 = scmp.ne.s32.totalorder %s222, %s223
      %p237 = scmp.eq.s32.totalorder %s29, 3
      %p238 = por %p236, %p237
      %p240 = scmp.ne.s32.totalorder %s223, %s239
      %p241 = scmp.eq.s32.totalorder %s29, 0
      %p242 = por %p240, %p241
      %p243 = scmp.le.s32.totalorder 1, %s23
      %p244 = scmp.lt.s32.totalorder %s23, 5
      %p245 = pnand %p243, %p244
      %p246 = pneg %p245
      // Predicated region
      $region9: #{tpu_custom_call.1} parent=5 // pred_check
        _
      $region10: #{tpu_custom_call.1} parent=5 // pred_check_branch
        %248 = sbr.rel (%p245) target = $region12
      $region11: #{tpu_custom_call.1} parent=5 // pred_region
        %s249 = ssub.s32 %s23, 1
        // Predicated region
        $region13: #{tpu_custom_call.1} parent=11 // pred_check
          %p250 = pneg %p188
        $region14: #{tpu_custom_call.1} parent=11 // pred_check_branch
          %252 = sbr.rel (%p250) target = $region16
        $region15: #{tpu_custom_call.1} parent=11 // pred_region
          %s254 = ssub.s32 2048, 2048
          %255 = vsyncadd [#allocation10], %s254
          %s256 = sshll.u32 [#allocation9], 4
          %s257 = int_to_ptr.vmem [resolvable:$true] %s256
          %262 = dma.hbm_to_vmem [thread:$0]  %s5, 2048, %s257, [#allocation10], 128, 128, 8
        $region16: #{tpu_custom_call.1} parent=11 // pred_fallthru
          _
        // Predicated region
        $region17: #{tpu_custom_call.1} parent=11 // pred_check
          %p263 = pneg %p209
        $region18: #{tpu_custom_call.1} parent=11 // pred_check_branch
          %265 = sbr.rel (%p263) target = $region20
        $region19: #{tpu_custom_call.1} parent=11 // pred_region
          _
        $region20: #{tpu_custom_call.1} parent=11 // pred_fallthru
          _
      $region12: #{tpu_custom_call.1} parent=5 // pred_fallthru
        _
      %p266 = scmp.lt.s32.totalorder %s23, 4
      // Predicated region
      $region21: #{tpu_custom_call.1} parent=5 // pred_check
        %p267 = pneg %p266
      $region22: #{tpu_custom_call.1} parent=5 // pred_check_branch
        %269 = sbr.rel (%p267) target = $region24
      $region23: #{tpu_custom_call.1} parent=5 // pred_region
        // Predicated region
        $region25: #{tpu_custom_call.1} parent=23 // pred_check
          %p270 = pneg %p55
        $region26: #{tpu_custom_call.1} parent=23 // pred_check_branch
          %272 = sbr.rel (%p270) target = $region28
        $region27: #{tpu_custom_call.1} parent=23 // pred_region
          %s273 = smul.u32 16, %s30
          %p274 = scmp.lt.s32.totalorder %s273, 31
          %s275 = scalar_select %p274, %s273, 31
          %s276 = smul.addr %s275, 8
          %s277 = scalar_lea.vmem %s0, %s276
          %s278 = smul.u32 16, %s30
        $region28: #{tpu_custom_call.1} parent=23 // pred_fallthru
          _
        // Predicated region
        $region29: #{tpu_custom_call.1} parent=23 // pred_check
          %p279 = pneg %p83
        $region30: #{tpu_custom_call.1} parent=23 // pred_check_branch
          %281 = sbr.rel (%p279) target = $region32
        $region31: #{tpu_custom_call.1} parent=23 // pred_region
          %s282 = sand.u32 %s73, 1
          %s283 = scalar_lea.sflag [#allocation4], %s282
          %s284 = sand.u32 %s73, 1
          %s285 = smul.addr %s284, 128
          %s286 = scalar_lea.vmem [#allocation3], %s285
          %s287 = smul.u32 16, %s30
          %s289 = ssub.s32 2048, 2048
          %290 = vsyncadd %s283, %s289
          %s291 = smul.addr %s287, 2
          %s292 = sadd.s32 %s31, %s291
          %s293 = smul.addr %s292, 128
          %s294 = scalar_lea.hbm %s1, %s293
          %s295 = sshll.u32 %s286, 4
          %s296 = int_to_ptr.vmem [resolvable:$true] %s295
          %301 = dma.hbm_to_vmem [thread:$0]  %s294, 2048, %s296, %s283, 256, 128, 8
        $region32: #{tpu_custom_call.1} parent=23 // pred_fallthru
          _
        // Predicated region
        $region33: #{tpu_custom_call.1} parent=23 // pred_check
          %p302 = pneg %p109
        $region34: #{tpu_custom_call.1} parent=23 // pred_check_branch
          %304 = sbr.rel (%p302) target = $region36
        $region35: #{tpu_custom_call.1} parent=23 // pred_region
          %s305 = sand.u32 %s23, 1
          %s306 = scalar_lea.sflag [#allocation7], %s305
          %s307 = sand.u32 %s99, 1
          %s308 = smul.addr %s307, 128
          %s309 = scalar_lea.vmem [#allocation6], %s308
          %s310 = smul.u32 16, %s31
          %s312 = ssub.s32 2048, 2048
          %313 = vsyncadd %s306, %s312
          %s314 = smul.addr %s310, 128
          %s315 = scalar_lea.hbm %s2, %s314
          %s316 = sshll.u32 %s309, 4
          %s317 = int_to_ptr.vmem [resolvable:$true] %s316
          %322 = dma.hbm_to_vmem [thread:$0]  %s315, 2048, %s317, %s306, 128, 128, 8
        $region36: #{tpu_custom_call.1} parent=23 // pred_fallthru
          _
        // Predicated region
        $region37: #{tpu_custom_call.1} parent=23 // pred_check
          %p323 = pneg %p135
        $region38: #{tpu_custom_call.1} parent=23 // pred_check_branch
          %325 = sbr.rel (%p323) target = $region40
        $region39: #{tpu_custom_call.1} parent=23 // pred_region
          %s326 = sand.u32 %s23, 1
          %s327 = scalar_lea.sflag [#allocation7], %s326
          %s328 = sand.u32 %s125, 1
          %s329 = smul.addr %s328, 128
          %s330 = scalar_lea.vmem [#allocation8], %s329
          %s331 = smul.u32 16, %s30
          %s333 = ssub.s32 2048, 2048
          %334 = vsyncadd %s327, %s333
          %s335 = smul.addr %s331, 128
          %s336 = scalar_lea.hbm %s3, %s335
          %s337 = sshll.u32 %s330, 4
          %s338 = int_to_ptr.vmem [resolvable:$true] %s337
          %343 = dma.hbm_to_vmem [thread:$0]  %s336, 2048, %s338, %s327, 128, 128, 8
        $region40: #{tpu_custom_call.1} parent=23 // pred_fallthru
          _
        // Predicated region
        $region41: #{tpu_custom_call.1} parent=23 // pred_check
          %p344 = pneg %p161
        $region42: #{tpu_custom_call.1} parent=23 // pred_check_branch
          %346 = sbr.rel (%p344) target = $region44
        $region43: #{tpu_custom_call.1} parent=23 // pred_region
          %s347 = smul.u32 16, %s30
          %p348 = scmp.lt.s32.totalorder %s347, 31
          %s349 = scalar_select %p348, %s347, 31
          %s350 = smul.addr %s349, 8
          %s351 = scalar_lea.vmem %s4, %s350
          %s352 = smul.u32 16, %s30
        $region44: #{tpu_custom_call.1} parent=23 // pred_fallthru
          _
      $region24: #{tpu_custom_call.1} parent=5 // pred_fallthru
        _
      %p353 = scmp.le.s32.totalorder 1, %s23
      %p354 = scmp.lt.s32.totalorder %s23, 5
      %p355 = pnand %p353, %p354
      %p356 = pneg %p355
      // Predicated region
      $region45: #{tpu_custom_call.1} parent=5 // pred_check
        _
      $region46: #{tpu_custom_call.1} parent=5 // pred_check_branch
        %358 = sbr.rel (%p355) target = $region48
      $region47: #{tpu_custom_call.1} parent=5 // pred_region
        %s359 = ssub.s32 %s23, 1
        %s360 = sand.u32 %s76, 1
        %s361 = scalar_lea.sflag [#allocation4], %s360
        %s362 = sand.u32 %s76, 1
        %s363 = smul.addr %s362, 128
        %s364 = scalar_lea.vmem [#allocation3], %s363
        // Predicated region
        $region49: #{tpu_custom_call.1} parent=47 // pred_check
          %p365 = pneg %p89
        $region50: #{tpu_custom_call.1} parent=47 // pred_check_branch
          %367 = sbr.rel (%p365) target = $region52
        $region51: #{tpu_custom_call.1} parent=47 // pred_region
          %368 = dma.done %s361, 2048
        $region52: #{tpu_custom_call.1} parent=47 // pred_fallthru
          _
        %s369 = sand.u32 %s28, 1
        %s370 = scalar_lea.sflag [#allocation7], %s369
        %s371 = sand.u32 %s102, 1
        %s372 = smul.addr %s371, 128
        %s373 = scalar_lea.vmem [#allocation6], %s372
        // Predicated region
        $region53: #{tpu_custom_call.1} parent=47 // pred_check
          %p374 = pneg %p115
        $region54: #{tpu_custom_call.1} parent=47 // pred_check_branch
          %376 = sbr.rel (%p374) target = $region56
        $region55: #{tpu_custom_call.1} parent=47 // pred_region
          %377 = dma.done %s370, 2048
        $region56: #{tpu_custom_call.1} parent=47 // pred_fallthru
          _
        %s378 = sand.u32 %s28, 1
        %s379 = scalar_lea.sflag [#allocation7], %s378
        %s380 = sand.u32 %s128, 1
        %s381 = smul.addr %s380, 128
        %s382 = scalar_lea.vmem [#allocation8], %s381
        // Predicated region
        $region57: #{tpu_custom_call.1} parent=47 // pred_check
          %p383 = pneg %p141
        $region58: #{tpu_custom_call.1} parent=47 // pred_check_branch
          %385 = sbr.rel (%p383) target = $region60
        $region59: #{tpu_custom_call.1} parent=47 // pred_region
          %386 = dma.done %s379, 2048
        $region60: #{tpu_custom_call.1} parent=47 // pred_fallthru
          _
        // Predicated region
        $region61: #{tpu_custom_call.1} parent=47 // pred_check
          %p387 = pneg %p188
        $region62: #{tpu_custom_call.1} parent=47 // pred_check_branch
          %389 = sbr.rel (%p387) target = $region64
        $region63: #{tpu_custom_call.1} parent=47 // pred_region
          %390 = dma.done [#allocation10], 2048
        $region64: #{tpu_custom_call.1} parent=47 // pred_fallthru
          _
        %s391 = smul.u32 16, %s32
        %p392 = scmp.lt.s32.totalorder %s391, 31
        %s393 = scalar_select %p392, %s391, 31
        %s394 = smul.addr %s393, 8
        %s395 = scalar_lea.vmem %s0, %s394
        %p396 = pneg %p61
        %p397 = pneg %p58
        %s398 = sand.u32 %s76, 1
        %s399 = scalar_lea.sflag [#allocation4], %s398
        %s400 = sand.u32 %s76, 1
        %s401 = smul.addr %s400, 128
        %s402 = scalar_lea.vmem [#allocation3], %s401
        %p403 = pneg %p89
        %p404 = pneg %p86
        %s405 = sand.u32 %s28, 1
        %s406 = scalar_lea.sflag [#allocation7], %s405
        %s407 = sand.u32 %s102, 1
        %s408 = smul.addr %s407, 128
        %s409 = scalar_lea.vmem [#allocation6], %s408
        %p410 = pneg %p115
        %p411 = pneg %p112
        %s412 = sand.u32 %s28, 1
        %s413 = scalar_lea.sflag [#allocation7], %s412
        %s414 = sand.u32 %s128, 1
        %s415 = smul.addr %s414, 128
        %s416 = scalar_lea.vmem [#allocation8], %s415
        %p417 = pneg %p141
        %p418 = pneg %p138
        %s419 = smul.u32 16, %s32
        %p420 = scmp.lt.s32.totalorder %s419, 31
        %s421 = scalar_select %p420, %s419, 31
        %s422 = smul.addr %s421, 8
        %s423 = scalar_lea.vmem %s4, %s422
        %p424 = pneg %p167
        %p425 = pneg %p164
        %p426 = pneg %p188
        %p427 = pneg %p185
        %p428 = pneg %p209
        %p429 = pneg %p206
        %p430 = pneg %p235
        %p431 = pneg %p232
        %s432 = sand.u32 %s222, 1
        %s433 = scalar_lea.sflag [#allocation5], %s432
        %s434 = sand.u32 %s222, 1
        %s435 = smul.addr %s434, 128
        %s436 = scalar_lea.vmem [#allocation11], %s435
        %s437 = smul.u32 16, %s32
        %p438 = scmp.lt.s32.totalorder %s437, 31
        %s439 = scalar_select %p438, %s437, 31
        %s440 = smul.addr %s439, 8
        %s441 = scalar_lea.vmem %s0, %s440
        %s442 = smul.u32 16, %s32
        %s443 = smul.u32 16, %s32
        %s444 = smul.u32 16, %s33
        %s445 = smul.u32 16, %s32
        %s446 = smul.u32 16, %s32
        %p447 = scmp.lt.s32.totalorder %s446, 31
        %s448 = scalar_select %p447, %s446, 31
        %s449 = smul.addr %s448, 8
        %s450 = scalar_lea.vmem %s4, %s449
        %s451 = smul.u32 16, %s32
        %s452 = smul.u32 16, %s32
        %p453 = scmp.eq.s32.totalorder %s33, 0
        // Predicated region
        $region65: #{tpu_custom_call.1} parent=47 // pred_check
          %p454 = pneg %p453
        $region66: #{tpu_custom_call.1} parent=47 // pred_check_branch
          %456 = sbr.rel (%p454) target = $region68
        $region67: #{tpu_custom_call.1} parent=47 // pred_region
          %457 = vst [vmem:[#allocation2] sm:$0xff] 0.0
          %458 = vst [vmem:[#allocation2 + $0x8] sm:$0xff] 0.0
          %459 = vst [vmem:[#allocation2 + $0x10] sm:$0xff] 0.0
          %460 = vst [vmem:[#allocation2 + $0x18] sm:$0xff] 0.0
          %461 = vst [vmem:[#allocation2 + $0x20] sm:$0xff] 0.0
          %462 = vst [vmem:[#allocation2 + $0x28] sm:$0xff] 0.0
          %463 = vst [vmem:[#allocation2 + $0x30] sm:$0xff] 0.0
          %464 = vst [vmem:[#allocation2 + $0x38] sm:$0xff] 0.0
          %465 = vst [vmem:[#allocation2 + $0x40] sm:$0xff] 0.0
          %466 = vst [vmem:[#allocation2 + $0x48] sm:$0xff] 0.0
          %467 = vst [vmem:[#allocation2 + $0x50] sm:$0xff] 0.0
          %468 = vst [vmem:[#allocation2 + $0x58] sm:$0xff] 0.0
          %469 = vst [vmem:[#allocation2 + $0x60] sm:$0xff] 0.0
          %470 = vst [vmem:[#allocation2 + $0x68] sm:$0xff] 0.0
          %471 = vst [vmem:[#allocation2 + $0x70] sm:$0xff] 0.0
          %472 = vst [vmem:[#allocation2 + $0x78] sm:$0xff] 0.0
        $region68: #{tpu_custom_call.1} parent=47 // pred_fallthru
          _
        %v473 = vld [vmem:[#allocation2] sm:$0xff]
        %v474 = vld [vmem:[#allocation2 + $0x8] sm:$0xff]
        %v475 = vld [vmem:[#allocation2 + $0x10] sm:$0xff]
        %v476 = vld [vmem:[#allocation2 + $0x18] sm:$0xff]
        %v477 = vld [vmem:[#allocation2 + $0x20] sm:$0xff]
        %v478 = vld [vmem:[#allocation2 + $0x28] sm:$0xff]
        %v479 = vld [vmem:[#allocation2 + $0x30] sm:$0xff]
        %v480 = vld [vmem:[#allocation2 + $0x38] sm:$0xff]
        %v481 = vld [vmem:[#allocation2 + $0x40] sm:$0xff]
        %v482 = vld [vmem:[#allocation2 + $0x48] sm:$0xff]
        %v483 = vld [vmem:[#allocation2 + $0x50] sm:$0xff]
        %v484 = vld [vmem:[#allocation2 + $0x58] sm:$0xff]
        %v485 = vld [vmem:[#allocation2 + $0x60] sm:$0xff]
        %v486 = vld [vmem:[#allocation2 + $0x68] sm:$0xff]
        %v487 = vld [vmem:[#allocation2 + $0x70] sm:$0xff]
        %v488 = vld [vmem:[#allocation2 + $0x78] sm:$0xff]
        %v489 = vld [vmem:[%s364] sm:$0xff]
        %v490 = vld [vmem:[%s364 + $0x8] sm:$0xff]
        %v491 = vld [vmem:[%s364 + $0x10] sm:$0xff]
        %v492 = vld [vmem:[%s364 + $0x18] sm:$0xff]
        %v493 = vld [vmem:[%s364 + $0x20] sm:$0xff]
        %v494 = vld [vmem:[%s364 + $0x28] sm:$0xff]
        %v495 = vld [vmem:[%s364 + $0x30] sm:$0xff]
        %v496 = vld [vmem:[%s364 + $0x38] sm:$0xff]
        %v497 = vld [vmem:[%s364 + $0x40] sm:$0xff]
        %v498 = vld [vmem:[%s364 + $0x48] sm:$0xff]
        %v499 = vld [vmem:[%s364 + $0x50] sm:$0xff]
        %v500 = vld [vmem:[%s364 + $0x58] sm:$0xff]
        %v501 = vld [vmem:[%s364 + $0x60] sm:$0xff]
        %v502 = vld [vmem:[%s364 + $0x68] sm:$0xff]
        %v503 = vld [vmem:[%s364 + $0x70] sm:$0xff]
        %v504 = vld [vmem:[%s364 + $0x78] sm:$0xff]
        %v505 = vld [vmem:[%s373] sm:$0xff]
        %v506 = vld [vmem:[%s373 + $0x8] sm:$0xff]
        %v507 = vld [vmem:[%s373 + $0x10] sm:$0xff]
        %v508 = vld [vmem:[%s373 + $0x18] sm:$0xff]
        %v509 = vld [vmem:[%s373 + $0x20] sm:$0xff]
        %v510 = vld [vmem:[%s373 + $0x28] sm:$0xff]
        %v511 = vld [vmem:[%s373 + $0x30] sm:$0xff]
        %v512 = vld [vmem:[%s373 + $0x38] sm:$0xff]
        %v513 = vld [vmem:[%s373 + $0x40] sm:$0xff]
        %v514 = vld [vmem:[%s373 + $0x48] sm:$0xff]
        %v515 = vld [vmem:[%s373 + $0x50] sm:$0xff]
        %v516 = vld [vmem:[%s373 + $0x58] sm:$0xff]
        %v517 = vld [vmem:[%s373 + $0x60] sm:$0xff]
        %v518 = vld [vmem:[%s373 + $0x68] sm:$0xff]
        %v519 = vld [vmem:[%s373 + $0x70] sm:$0xff]
        %v520 = vld [vmem:[%s373 + $0x78] sm:$0xff]
        %521 = vmatprep.subr.mxu0 0.0
        %522 = vmatpush1.msra.mxu0 %v505
        %523 = vmatprep.subr.mxu0 0.0
        %524 = vmatpush1.msra.mxu0 %v506
        %525 = vmatprep.subr.mxu0 0.0
        %526 = vmatpush1.msra.mxu0 %v507
        %527 = vmatprep.subr.mxu0 0.0
        %528 = vmatpush1.msra.mxu0 %v508
        %529 = vmatprep.subr.mxu0 0.0
        %530 = vmatpush1.msra.mxu0 %v509
        %531 = vmatprep.subr.mxu0 0.0
        %532 = vmatpush1.msra.mxu0 %v510
        %533 = vmatprep.subr.mxu0 0.0
        %534 = vmatpush1.msra.mxu0 %v511
        %535 = vmatprep.subr.mxu0 0.0
        %536 = vmatpush1.msra.mxu0 %v512
        %537 = vmatprep.subr.mxu0 0.0
        %538 = vmatpush1.msra.mxu0 %v513
        %539 = vmatprep.subr.mxu0 0.0
        %540 = vmatpush1.msra.mxu0 %v514
        %541 = vmatprep.subr.mxu0 0.0
        %542 = vmatpush1.msra.mxu0 %v515
        %543 = vmatprep.subr.mxu0 0.0
        %544 = vmatpush1.msra.mxu0 %v516
        %545 = vmatprep.subr.mxu0 0.0
        %546 = vmatpush1.msra.mxu0 %v517
        %547 = vmatprep.subr.mxu0 0.0
        %548 = vmatpush1.msra.mxu0 %v518
        %549 = vmatprep.subr.mxu0 0.0
        %550 = vmatpush1.msra.mxu0 %v519
        %551 = vmatprep.subr.mxu0 0.0
        %552 = vmatpush1.msra.mxu0 %v520
        %553 = vmatprep.subr.mxu0 0.0
        %554 = vmatpush1.msra.mxu0 0.0
        %555 = vmatprep.subr.mxu0 0.0
        %556 = vmatpush1.msra.mxu0 0.0
        %557 = vmatprep.subr.mxu0 0.0
        %558 = vmatpush1.msra.mxu0 0.0
        %559 = vmatprep.subr.mxu0 0.0
        %560 = vmatpush1.msra.mxu0 0.0
        %561 = vmatprep.subr.mxu0 0.0
        %562 = vmatpush1.msra.mxu0 0.0
        %563 = vmatprep.subr.mxu0 0.0
        %564 = vmatpush1.msra.mxu0 0.0
        %565 = vmatprep.subr.mxu0 0.0
        %566 = vmatpush1.msra.mxu0 0.0
        %567 = vmatprep.subr.mxu0 0.0
        %568 = vmatpush1.msra.mxu0 0.0
        %569 = vmatprep.subr.mxu0 0.0
        %570 = vmatpush1.msra.mxu0 0.0
        %571 = vmatprep.subr.mxu0 0.0
        %572 = vmatpush1.msra.mxu0 0.0
        %573 = vmatprep.subr.mxu0 0.0
        %574 = vmatpush1.msra.mxu0 0.0
        %575 = vmatprep.subr.mxu0 0.0
        %576 = vmatpush1.msra.mxu0 0.0
        %577 = vmatprep.subr.mxu0 0.0
        %578 = vmatpush1.msra.mxu0 0.0
        %579 = vmatprep.subr.mxu0 0.0
        %580 = vmatpush1.msra.mxu0 0.0
        %581 = vmatprep.subr.mxu0 0.0
        %582 = vmatpush1.msra.mxu0 0.0
        %583 = vmatprep.subr.mxu0 0.0
        %584 = vmatpush1.msra.mxu0 0.0
        %585 = vmatprep.mubr.f32.mxu0 0.0
        %586 = vmatmul.mubr.f32.gmra.mrb[0].mxu0 %v489
        %v587 = vpop.f32.mrb[0].mxu0
        %v588 = vadd.f32 0.0, %v587
        %v589 = vpop.f32.mrb[0].mxu0
        %590 = vmatprep.mubr.f32.mxu0 0.0
        %591 = vmatmul.mubr.f32.gmra.mrb[0].mxu0 %v490
        %v592 = vpop.f32.mrb[0].mxu0
        %v593 = vadd.f32 0.0, %v592
        %v594 = vpop.f32.mrb[0].mxu0
        %595 = vmatprep.mubr.f32.mxu0 0.0
        %596 = vmatmul.mubr.f32.gmra.mrb[0].mxu0 %v491
        %v597 = vpop.f32.mrb[0].mxu0
        %v598 = vadd.f32 0.0, %v597
        %v599 = vpop.f32.mrb[0].mxu0
        %600 = vmatprep.mubr.f32.mxu0 0.0
        %601 = vmatmul.mubr.f32.gmra.mrb[0].mxu0 %v492
        %v602 = vpop.f32.mrb[0].mxu0
        %v603 = vadd.f32 0.0, %v602
        %v604 = vpop.f32.mrb[0].mxu0
        %605 = vmatprep.mubr.f32.mxu0 0.0
        %606 = vmatmul.mubr.f32.gmra.mrb[0].mxu0 %v493
        %v607 = vpop.f32.mrb[0].mxu0
        %v608 = vadd.f32 0.0, %v607
        %v609 = vpop.f32.mrb[0].mxu0
        %610 = vmatprep.mubr.f32.mxu0 0.0
        %611 = vmatmul.mubr.f32.gmra.mrb[0].mxu0 %v494
        %v612 = vpop.f32.mrb[0].mxu0
        %v613 = vadd.f32 0.0, %v612
        %v614 = vpop.f32.mrb[0].mxu0
        %615 = vmatprep.mubr.f32.mxu0 0.0
        %616 = vmatmul.mubr.f32.gmra.mrb[0].mxu0 %v495
        %v617 = vpop.f32.mrb[0].mxu0
        %v618 = vadd.f32 0.0, %v617
        %v619 = vpop.f32.mrb[0].mxu0
        %620 = vmatprep.mubr.f32.mxu0 0.0
        %621 = vmatmul.mubr.f32.gmra.mrb[0].mxu0 %v496
        %v622 = vpop.f32.mrb[0].mxu0
        %v623 = vadd.f32 0.0, %v622
        %v624 = vpop.f32.mrb[0].mxu0
        %625 = vmatprep.mubr.f32.mxu0 0.0
        %626 = vmatmul.mubr.f32.gmra.mrb[0].mxu0 %v497
        %v627 = vpop.f32.mrb[0].mxu0
        %v628 = vadd.f32 0.0, %v627
        %v629 = vpop.f32.mrb[0].mxu0
        %630 = vmatprep.mubr.f32.mxu0 0.0
        %631 = vmatmul.mubr.f32.gmra.mrb[0].mxu0 %v498
        %v632 = vpop.f32.mrb[0].mxu0
        %v633 = vadd.f32 0.0, %v632
        %v634 = vpop.f32.mrb[0].mxu0
        %635 = vmatprep.mubr.f32.mxu0 0.0
        %636 = vmatmul.mubr.f32.gmra.mrb[0].mxu0 %v499
        %v637 = vpop.f32.mrb[0].mxu0
        %v638 = vadd.f32 0.0, %v637
        %v639 = vpop.f32.mrb[0].mxu0
        %640 = vmatprep.mubr.f32.mxu0 0.0
        %641 = vmatmul.mubr.f32.gmra.mrb[0].mxu0 %v500
        %v642 = vpop.f32.mrb[0].mxu0
        %v643 = vadd.f32 0.0, %v642
        %v644 = vpop.f32.mrb[0].mxu0
        %645 = vmatprep.mubr.f32.mxu0 0.0
        %646 = vmatmul.mubr.f32.gmra.mrb[0].mxu0 %v501
        %v647 = vpop.f32.mrb[0].mxu0
        %v648 = vadd.f32 0.0, %v647
        %v649 = vpop.f32.mrb[0].mxu0
        %650 = vmatprep.mubr.f32.mxu0 0.0
        %651 = vmatmul.mubr.f32.gmra.mrb[0].mxu0 %v502
        %v652 = vpop.f32.mrb[0].mxu0
        %v653 = vadd.f32 0.0, %v652
        %v654 = vpop.f32.mrb[0].mxu0
        %655 = vmatprep.mubr.f32.mxu0 0.0
        %656 = vmatmul.mubr.f32.gmra.mrb[0].mxu0 %v503
        %v657 = vpop.f32.mrb[0].mxu0
        %v658 = vadd.f32 0.0, %v657
        %v659 = vpop.f32.mrb[0].mxu0
        %660 = vmatprep.mubr.f32.mxu0 0.0
        %661 = vmatmul.mubr.f32.gmra.mrb[0].mxu0 %v504
        %v662 = vpop.f32.mrb[0].mxu0
        %v663 = vadd.f32 0.0, %v662
        %v664 = vpop.f32.mrb[0].mxu0
        %665 = vdwg.mxu0
        %v666 = vadd.f32 %v473, %v588
        %v667 = vadd.f32 %v474, %v593
        %v668 = vadd.f32 %v475, %v598
        %v669 = vadd.f32 %v476, %v603
        %v670 = vadd.f32 %v477, %v608
        %v671 = vadd.f32 %v478, %v613
        %v672 = vadd.f32 %v479, %v618
        %v673 = vadd.f32 %v480, %v623
        %v674 = vadd.f32 %v481, %v628
        %v675 = vadd.f32 %v482, %v633
        %v676 = vadd.f32 %v483, %v638
        %v677 = vadd.f32 %v484, %v643
        %v678 = vadd.f32 %v485, %v648
        %v679 = vadd.f32 %v486, %v653
        %v680 = vadd.f32 %v487, %v658
        %v681 = vadd.f32 %v488, %v663
        %682 = vst [vmem:[#allocation2] sm:$0xff] %v666
        %683 = vst [vmem:[#allocation2 + $0x8] sm:$0xff] %v667
        %684 = vst [vmem:[#allocation2 + $0x10] sm:$0xff] %v668
        %685 = vst [vmem:[#allocation2 + $0x18] sm:$0xff] %v669
        %686 = vst [vmem:[#allocation2 + $0x20] sm:$0xff] %v670
        %687 = vst [vmem:[#allocation2 + $0x28] sm:$0xff] %v671
        %688 = vst [vmem:[#allocation2 + $0x30] sm:$0xff] %v672
        %689 = vst [vmem:[#allocation2 + $0x38] sm:$0xff] %v673
        %690 = vst [vmem:[#allocation2 + $0x40] sm:$0xff] %v674
        %691 = vst [vmem:[#allocation2 + $0x48] sm:$0xff] %v675
        %692 = vst [vmem:[#allocation2 + $0x50] sm:$0xff] %v676
        %693 = vst [vmem:[#allocation2 + $0x58] sm:$0xff] %v677
        %694 = vst [vmem:[#allocation2 + $0x60] sm:$0xff] %v678
        %695 = vst [vmem:[#allocation2 + $0x68] sm:$0xff] %v679
        %696 = vst [vmem:[#allocation2 + $0x70] sm:$0xff] %v680
        %697 = vst [vmem:[#allocation2 + $0x78] sm:$0xff] %v681
        %p698 = scmp.eq.s32.totalorder %s33, 1
        // Predicated region
        $region69: #{tpu_custom_call.1} parent=47 // pred_check
          %p699 = pneg %p698
        $region70: #{tpu_custom_call.1} parent=47 // pred_check_branch
          %701 = sbr.rel (%p699) target = $region72
        $region71: #{tpu_custom_call.1} parent=47 // pred_region
          %v702 = vld [vmem:[%s441] sm:$0xff]
          %v703 = vld [vmem:[%s441 + $0x8] sm:$0xff]
          %v704 = vld [vmem:[%s441 + $0x10] sm:$0xff]
          %v705 = vld [vmem:[%s441 + $0x18] sm:$0xff]
          %v706 = vld [vmem:[%s441 + $0x20] sm:$0xff]
          %v707 = vld [vmem:[%s441 + $0x28] sm:$0xff]
          %v708 = vld [vmem:[%s441 + $0x30] sm:$0xff]
          %v709 = vld [vmem:[%s441 + $0x38] sm:$0xff]
          %v710 = vld [vmem:[%s441 + $0x40] sm:$0xff]
          %v711 = vld [vmem:[%s441 + $0x48] sm:$0xff]
          %v712 = vld [vmem:[%s441 + $0x50] sm:$0xff]
          %v713 = vld [vmem:[%s441 + $0x58] sm:$0xff]
          %v714 = vld [vmem:[%s441 + $0x60] sm:$0xff]
          %v715 = vld [vmem:[%s441 + $0x68] sm:$0xff]
          %v716 = vld [vmem:[%s441 + $0x70] sm:$0xff]
          %v717 = vld [vmem:[%s441 + $0x78] sm:$0xff]
          %v718 = vld [vmem:[#allocation9] sm:$0xff]
          %v719 = vld [vmem:[#allocation9 + $0x8] sm:$0xff]
          %v720 = vld [vmem:[#allocation9 + $0x10] sm:$0xff]
          %v721 = vld [vmem:[#allocation9 + $0x18] sm:$0xff]
          %v722 = vld [vmem:[#allocation9 + $0x20] sm:$0xff]
          %v723 = vld [vmem:[#allocation9 + $0x28] sm:$0xff]
          %v724 = vld [vmem:[#allocation9 + $0x30] sm:$0xff]
          %v725 = vld [vmem:[#allocation9 + $0x38] sm:$0xff]
          %v726 = vld [vmem:[#allocation9 + $0x40] sm:$0xff]
          %v727 = vld [vmem:[#allocation9 + $0x48] sm:$0xff]
          %v728 = vld [vmem:[#allocation9 + $0x50] sm:$0xff]
          %v729 = vld [vmem:[#allocation9 + $0x58] sm:$0xff]
          %v730 = vld [vmem:[#allocation9 + $0x60] sm:$0xff]
          %v731 = vld [vmem:[#allocation9 + $0x68] sm:$0xff]
          %v732 = vld [vmem:[#allocation9 + $0x70] sm:$0xff]
          %v733 = vld [vmem:[#allocation9 + $0x78] sm:$0xff]
          %v734 = vld [vmem:[#allocation2] sm:$0xff]
          %v735 = vld [vmem:[#allocation2 + $0x8] sm:$0xff]
          %v736 = vld [vmem:[#allocation2 + $0x10] sm:$0xff]
          %v737 = vld [vmem:[#allocation2 + $0x18] sm:$0xff]
          %v738 = vld [vmem:[#allocation2 + $0x20] sm:$0xff]
          %v739 = vld [vmem:[#allocation2 + $0x28] sm:$0xff]
          %v740 = vld [vmem:[#allocation2 + $0x30] sm:$0xff]
          %v741 = vld [vmem:[#allocation2 + $0x38] sm:$0xff]
          %v742 = vld [vmem:[#allocation2 + $0x40] sm:$0xff]
          %v743 = vld [vmem:[#allocation2 + $0x48] sm:$0xff]
          %v744 = vld [vmem:[#allocation2 + $0x50] sm:$0xff]
          %v745 = vld [vmem:[#allocation2 + $0x58] sm:$0xff]
          %v746 = vld [vmem:[#allocation2 + $0x60] sm:$0xff]
          %v747 = vld [vmem:[#allocation2 + $0x68] sm:$0xff]
          %v748 = vld [vmem:[#allocation2 + $0x70] sm:$0xff]
          %v749 = vld [vmem:[#allocation2 + $0x78] sm:$0xff]
          %v750 = vld [vmem:[%s382] sm:$0xff]
          %v751 = vld [vmem:[%s382 + $0x8] sm:$0xff]
          %v752 = vld [vmem:[%s382 + $0x10] sm:$0xff]
          %v753 = vld [vmem:[%s382 + $0x18] sm:$0xff]
          %v754 = vld [vmem:[%s382 + $0x20] sm:$0xff]
          %v755 = vld [vmem:[%s382 + $0x28] sm:$0xff]
          %v756 = vld [vmem:[%s382 + $0x30] sm:$0xff]
          %v757 = vld [vmem:[%s382 + $0x38] sm:$0xff]
          %v758 = vld [vmem:[%s382 + $0x40] sm:$0xff]
          %v759 = vld [vmem:[%s382 + $0x48] sm:$0xff]
          %v760 = vld [vmem:[%s382 + $0x50] sm:$0xff]
          %v761 = vld [vmem:[%s382 + $0x58] sm:$0xff]
          %v762 = vld [vmem:[%s382 + $0x60] sm:$0xff]
          %v763 = vld [vmem:[%s382 + $0x68] sm:$0xff]
          %v764 = vld [vmem:[%s382 + $0x70] sm:$0xff]
          %v765 = vld [vmem:[%s382 + $0x78] sm:$0xff]
          %v766 = vsub.f32 %v734, %v750
          %v767 = vsub.f32 %v735, %v751
          %v768 = vsub.f32 %v736, %v752
          %v769 = vsub.f32 %v737, %v753
          %v770 = vsub.f32 %v738, %v754
          %v771 = vsub.f32 %v739, %v755
          %v772 = vsub.f32 %v740, %v756
          %v773 = vsub.f32 %v741, %v757
          %v774 = vsub.f32 %v742, %v758
          %v775 = vsub.f32 %v743, %v759
          %v776 = vsub.f32 %v744, %v760
          %v777 = vsub.f32 %v745, %v761
          %v778 = vsub.f32 %v746, %v762
          %v779 = vsub.f32 %v747, %v763
          %v780 = vsub.f32 %v748, %v764
          %v781 = vsub.f32 %v749, %v765
          %v782 = vld [vmem:[%s450] sm:$0xff]
          %v783 = vld [vmem:[%s450 + $0x8] sm:$0xff]
          %v784 = vld [vmem:[%s450 + $0x10] sm:$0xff]
          %v785 = vld [vmem:[%s450 + $0x18] sm:$0xff]
          %v786 = vld [vmem:[%s450 + $0x20] sm:$0xff]
          %v787 = vld [vmem:[%s450 + $0x28] sm:$0xff]
          %v788 = vld [vmem:[%s450 + $0x30] sm:$0xff]
          %v789 = vld [vmem:[%s450 + $0x38] sm:$0xff]
          %v790 = vld [vmem:[%s450 + $0x40] sm:$0xff]
          %v791 = vld [vmem:[%s450 + $0x48] sm:$0xff]
          %v792 = vld [vmem:[%s450 + $0x50] sm:$0xff]
          %v793 = vld [vmem:[%s450 + $0x58] sm:$0xff]
          %v794 = vld [vmem:[%s450 + $0x60] sm:$0xff]
          %v795 = vld [vmem:[%s450 + $0x68] sm:$0xff]
          %v796 = vld [vmem:[%s450 + $0x70] sm:$0xff]
          %v797 = vld [vmem:[%s450 + $0x78] sm:$0xff]
          %799 = vset.pattern.permute.xlu0 0
          %800 = vperm.xlu0 %799, %v782
          %v801 = vpop.permute.xlu0 %800
          %804 = vset.pattern.permute.xlu0 0
          %805 = vperm.xlu0 %804, %v783
          %v806 = vpop.permute.xlu0 %805
          %809 = vset.pattern.permute.xlu0 0
          %810 = vperm.xlu0 %809, %v784
          %v811 = vpop.permute.xlu0 %810
          %814 = vset.pattern.permute.xlu0 0
          %815 = vperm.xlu0 %814, %v785
          %v816 = vpop.permute.xlu0 %815
          %819 = vset.pattern.permute.xlu0 0
          %820 = vperm.xlu0 %819, %v786
          %v821 = vpop.permute.xlu0 %820
          %824 = vset.pattern.permute.xlu0 0
          %825 = vperm.xlu0 %824, %v787
          %v826 = vpop.permute.xlu0 %825
          %829 = vset.pattern.permute.xlu0 0
          %830 = vperm.xlu0 %829, %v788
          %v831 = vpop.permute.xlu0 %830
          %834 = vset.pattern.permute.xlu0 0
          %835 = vperm.xlu0 %834, %v789
          %v836 = vpop.permute.xlu0 %835
          %839 = vset.pattern.permute.xlu0 0
          %840 = vperm.xlu0 %839, %v790
          %v841 = vpop.permute.xlu0 %840
          %844 = vset.pattern.permute.xlu0 0
          %845 = vperm.xlu0 %844, %v791
          %v846 = vpop.permute.xlu0 %845
          %849 = vset.pattern.permute.xlu0 0
          %850 = vperm.xlu0 %849, %v792
          %v851 = vpop.permute.xlu0 %850
          %854 = vset.pattern.permute.xlu0 0
          %855 = vperm.xlu0 %854, %v793
          %v856 = vpop.permute.xlu0 %855
          %859 = vset.pattern.permute.xlu0 0
          %860 = vperm.xlu0 %859, %v794
          %v861 = vpop.permute.xlu0 %860
          %864 = vset.pattern.permute.xlu0 0
          %865 = vperm.xlu0 %864, %v795
          %v866 = vpop.permute.xlu0 %865
          %869 = vset.pattern.permute.xlu0 0
          %870 = vperm.xlu0 %869, %v796
          %v871 = vpop.permute.xlu0 %870
          %874 = vset.pattern.permute.xlu0 0
          %875 = vperm.xlu0 %874, %v797
          %v876 = vpop.permute.xlu0 %875
          %v878 = vmul.f32 %v766, %v801
          %v879 = vmul.f32 %v767, %v806
          %v880 = vmul.f32 %v768, %v811
          %v881 = vmul.f32 %v769, %v816
          %v882 = vmul.f32 %v770, %v821
          %v883 = vmul.f32 %v771, %v826
          %v884 = vmul.f32 %v772, %v831
          %v885 = vmul.f32 %v773, %v836
          %v886 = vmul.f32 %v774, %v841
          %v887 = vmul.f32 %v775, %v846
          %v888 = vmul.f32 %v776, %v851
          %v889 = vmul.f32 %v777, %v856
          %v890 = vmul.f32 %v778, %v861
          %v891 = vmul.f32 %v779, %v866
          %v892 = vmul.f32 %v780, %v871
          %v893 = vmul.f32 %v781, %v876
          %894 = vmatprep.subr.mxu0 0.0
          %895 = vmatpush1.msra.mxu0 %v718
          %896 = vmatprep.subr.mxu0 0.0
          %897 = vmatpush1.msra.mxu0 %v719
          %898 = vmatprep.subr.mxu0 0.0
          %899 = vmatpush1.msra.mxu0 %v720
          %900 = vmatprep.subr.mxu0 0.0
          %901 = vmatpush1.msra.mxu0 %v721
          %902 = vmatprep.subr.mxu0 0.0
          %903 = vmatpush1.msra.mxu0 %v722
          %904 = vmatprep.subr.mxu0 0.0
          %905 = vmatpush1.msra.mxu0 %v723
          %906 = vmatprep.subr.mxu0 0.0
          %907 = vmatpush1.msra.mxu0 %v724
          %908 = vmatprep.subr.mxu0 0.0
          %909 = vmatpush1.msra.mxu0 %v725
          %910 = vmatprep.subr.mxu0 0.0
          %911 = vmatpush1.msra.mxu0 %v726
          %912 = vmatprep.subr.mxu0 0.0
          %913 = vmatpush1.msra.mxu0 %v727
          %914 = vmatprep.subr.mxu0 0.0
          %915 = vmatpush1.msra.mxu0 %v728
          %916 = vmatprep.subr.mxu0 0.0
          %917 = vmatpush1.msra.mxu0 %v729
          %918 = vmatprep.subr.mxu0 0.0
          %919 = vmatpush1.msra.mxu0 %v730
          %920 = vmatprep.subr.mxu0 0.0
          %921 = vmatpush1.msra.mxu0 %v731
          %922 = vmatprep.subr.mxu0 0.0
          %923 = vmatpush1.msra.mxu0 %v732
          %924 = vmatprep.subr.mxu0 0.0
          %925 = vmatpush1.msra.mxu0 %v733
          %926 = vmatprep.subr.mxu0 0.0
          %927 = vmatpush1.msra.mxu0 0.0
          %928 = vmatprep.subr.mxu0 0.0
          %929 = vmatpush1.msra.mxu0 0.0
          %930 = vmatprep.subr.mxu0 0.0
          %931 = vmatpush1.msra.mxu0 0.0
          %932 = vmatprep.subr.mxu0 0.0
          %933 = vmatpush1.msra.mxu0 0.0
          %934 = vmatprep.subr.mxu0 0.0
          %935 = vmatpush1.msra.mxu0 0.0
          %936 = vmatprep.subr.mxu0 0.0
          %937 = vmatpush1.msra.mxu0 0.0
          %938 = vmatprep.subr.mxu0 0.0
          %939 = vmatpush1.msra.mxu0 0.0
          %940 = vmatprep.subr.mxu0 0.0
          %941 = vmatpush1.msra.mxu0 0.0
          %942 = vmatprep.subr.mxu0 0.0
          %943 = vmatpush1.msra.mxu0 0.0
          %944 = vmatprep.subr.mxu0 0.0
          %945 = vmatpush1.msra.mxu0 0.0
          %946 = vmatprep.subr.mxu0 0.0
          %947 = vmatpush1.msra.mxu0 0.0
          %948 = vmatprep.subr.mxu0 0.0
          %949 = vmatpush1.msra.mxu0 0.0
          %950 = vmatprep.subr.mxu0 0.0
          %951 = vmatpush1.msra.mxu0 0.0
          %952 = vmatprep.subr.mxu0 0.0
          %953 = vmatpush1.msra.mxu0 0.0
          %954 = vmatprep.subr.mxu0 0.0
          %955 = vmatpush1.msra.mxu0 0.0
          %956 = vmatprep.subr.mxu0 0.0
          %957 = vmatpush1.msra.mxu0 0.0
          %958 = vmatprep.mubr.f32.mxu0 0.0
          %959 = vmatmul.mubr.f32.gmra.mrb[0].mxu0 %v702
          %v960 = vpop.f32.mrb[0].mxu0
          %v961 = vadd.f32 %v878, %v960
          %v962 = vpop.f32.mrb[0].mxu0
          %963 = vmatprep.mubr.f32.mxu0 0.0
          %964 = vmatmul.mubr.f32.gmra.mrb[0].mxu0 %v703
          %v965 = vpop.f32.mrb[0].mxu0
          %v966 = vadd.f32 %v879, %v965
          %v967 = vpop.f32.mrb[0].mxu0
          %968 = vmatprep.mubr.f32.mxu0 0.0
          %969 = vmatmul.mubr.f32.gmra.mrb[0].mxu0 %v704
          %v970 = vpop.f32.mrb[0].mxu0
          %v971 = vadd.f32 %v880, %v970
          %v972 = vpop.f32.mrb[0].mxu0
          %973 = vmatprep.mubr.f32.mxu0 0.0
          %974 = vmatmul.mubr.f32.gmra.mrb[0].mxu0 %v705
          %v975 = vpop.f32.mrb[0].mxu0
          %v976 = vadd.f32 %v881, %v975
          %v977 = vpop.f32.mrb[0].mxu0
          %978 = vmatprep.mubr.f32.mxu0 0.0
          %979 = vmatmul.mubr.f32.gmra.mrb[0].mxu0 %v706
          %v980 = vpop.f32.mrb[0].mxu0
          %v981 = vadd.f32 %v882, %v980
          %v982 = vpop.f32.mrb[0].mxu0
          %983 = vmatprep.mubr.f32.mxu0 0.0
          %984 = vmatmul.mubr.f32.gmra.mrb[0].mxu0 %v707
          %v985 = vpop.f32.mrb[0].mxu0
          %v986 = vadd.f32 %v883, %v985
          %v987 = vpop.f32.mrb[0].mxu0
          %988 = vmatprep.mubr.f32.mxu0 0.0
          %989 = vmatmul.mubr.f32.gmra.mrb[0].mxu0 %v708
          %v990 = vpop.f32.mrb[0].mxu0
          %v991 = vadd.f32 %v884, %v990
          %v992 = vpop.f32.mrb[0].mxu0
          %993 = vmatprep.mubr.f32.mxu0 0.0
          %994 = vmatmul.mubr.f32.gmra.mrb[0].mxu0 %v709
          %v995 = vpop.f32.mrb[0].mxu0
          %v996 = vadd.f32 %v885, %v995
          %v997 = vpop.f32.mrb[0].mxu0
          %998 = vmatprep.mubr.f32.mxu0 0.0
          %999 = vmatmul.mubr.f32.gmra.mrb[0].mxu0 %v710
          %v1000 = vpop.f32.mrb[0].mxu0
          %v1001 = vadd.f32 %v886, %v1000
          %v1002 = vpop.f32.mrb[0].mxu0
          %1003 = vmatprep.mubr.f32.mxu0 0.0
          %1004 = vmatmul.mubr.f32.gmra.mrb[0].mxu0 %v711
          %v1005 = vpop.f32.mrb[0].mxu0
          %v1006 = vadd.f32 %v887, %v1005
          %v1007 = vpop.f32.mrb[0].mxu0
          %1008 = vmatprep.mubr.f32.mxu0 0.0
          %1009 = vmatmul.mubr.f32.gmra.mrb[0].mxu0 %v712
          %v1010 = vpop.f32.mrb[0].mxu0
          %v1011 = vadd.f32 %v888, %v1010
          %v1012 = vpop.f32.mrb[0].mxu0
          %1013 = vmatprep.mubr.f32.mxu0 0.0
          %1014 = vmatmul.mubr.f32.gmra.mrb[0].mxu0 %v713
          %v1015 = vpop.f32.mrb[0].mxu0
          %v1016 = vadd.f32 %v889, %v1015
          %v1017 = vpop.f32.mrb[0].mxu0
          %1018 = vmatprep.mubr.f32.mxu0 0.0
          %1019 = vmatmul.mubr.f32.gmra.mrb[0].mxu0 %v714
          %v1020 = vpop.f32.mrb[0].mxu0
          %v1021 = vadd.f32 %v890, %v1020
          %v1022 = vpop.f32.mrb[0].mxu0
          %1023 = vmatprep.mubr.f32.mxu0 0.0
          %1024 = vmatmul.mubr.f32.gmra.mrb[0].mxu0 %v715
          %v1025 = vpop.f32.mrb[0].mxu0
          %v1026 = vadd.f32 %v891, %v1025
          %v1027 = vpop.f32.mrb[0].mxu0
          %1028 = vmatprep.mubr.f32.mxu0 0.0
          %1029 = vmatmul.mubr.f32.gmra.mrb[0].mxu0 %v716
          %v1030 = vpop.f32.mrb[0].mxu0
          %v1031 = vadd.f32 %v892, %v1030
          %v1032 = vpop.f32.mrb[0].mxu0
          %1033 = vmatprep.mubr.f32.mxu0 0.0
          %1034 = vmatmul.mubr.f32.gmra.mrb[0].mxu0 %v717
          %v1035 = vpop.f32.mrb[0].mxu0
          %v1036 = vadd.f32 %v893, %v1035
          %v1037 = vpop.f32.mrb[0].mxu0
          %1038 = vdwg.mxu0
          %v1039 = vld [vmem:[%s6] sm:$0x1]
          %v1041 = vlaneseq
          %v1042 = vshrl.u32 %v1041, 7
          %v1043 = vsub.s32 0, %v1042
          %v1044 = vrot.slane %v1039, %v1043
          %v1046 = vadd.f32 %v961, %v1044
          %v1047 = vadd.f32 %v966, %v1044
          %v1048 = vadd.f32 %v971, %v1044
          %v1049 = vadd.f32 %v976, %v1044
          %v1050 = vadd.f32 %v981, %v1044
          %v1051 = vadd.f32 %v986, %v1044
          %v1052 = vadd.f32 %v991, %v1044
          %v1053 = vadd.f32 %v996, %v1044
          %v1054 = vadd.f32 %v1001, %v1044
          %v1055 = vadd.f32 %v1006, %v1044
          %v1056 = vadd.f32 %v1011, %v1044
          %v1057 = vadd.f32 %v1016, %v1044
          %v1058 = vadd.f32 %v1021, %v1044
          %v1059 = vadd.f32 %v1026, %v1044
          %v1060 = vadd.f32 %v1031, %v1044
          %v1061 = vadd.f32 %v1036, %v1044
          %v1062 = vmax.f32 %v1046, 0.0
          %v1063 = vmax.f32 %v1047, 0.0
          %v1064 = vmax.f32 %v1048, 0.0
          %v1065 = vmax.f32 %v1049, 0.0
          %v1066 = vmax.f32 %v1050, 0.0
          %v1067 = vmax.f32 %v1051, 0.0
          %v1068 = vmax.f32 %v1052, 0.0
          %v1069 = vmax.f32 %v1053, 0.0
          %v1070 = vmax.f32 %v1054, 0.0
          %v1071 = vmax.f32 %v1055, 0.0
          %v1072 = vmax.f32 %v1056, 0.0
          %v1073 = vmax.f32 %v1057, 0.0
          %v1074 = vmax.f32 %v1058, 0.0
          %v1075 = vmax.f32 %v1059, 0.0
          %v1076 = vmax.f32 %v1060, 0.0
          %v1077 = vmax.f32 %v1061, 0.0
          %1078 = vst [vmem:[%s436] sm:$0xff] %v1062
          %1079 = vst [vmem:[%s436 + $0x8] sm:$0xff] %v1063
          %1080 = vst [vmem:[%s436 + $0x10] sm:$0xff] %v1064
          %1081 = vst [vmem:[%s436 + $0x18] sm:$0xff] %v1065
          %1082 = vst [vmem:[%s436 + $0x20] sm:$0xff] %v1066
          %1083 = vst [vmem:[%s436 + $0x28] sm:$0xff] %v1067
          %1084 = vst [vmem:[%s436 + $0x30] sm:$0xff] %v1068
          %1085 = vst [vmem:[%s436 + $0x38] sm:$0xff] %v1069
          %1086 = vst [vmem:[%s436 + $0x40] sm:$0xff] %v1070
          %1087 = vst [vmem:[%s436 + $0x48] sm:$0xff] %v1071
          %1088 = vst [vmem:[%s436 + $0x50] sm:$0xff] %v1072
          %1089 = vst [vmem:[%s436 + $0x58] sm:$0xff] %v1073
          %1090 = vst [vmem:[%s436 + $0x60] sm:$0xff] %v1074
          %1091 = vst [vmem:[%s436 + $0x68] sm:$0xff] %v1075
          %1092 = vst [vmem:[%s436 + $0x70] sm:$0xff] %v1076
          %1093 = vst [vmem:[%s436 + $0x78] sm:$0xff] %v1077
        $region72: #{tpu_custom_call.1} parent=47 // pred_fallthru
          _
        %s1094 = sand.u32 %s222, 1
        %s1095 = scalar_lea.sflag [#allocation5], %s1094
        %s1096 = sand.u32 %s222, 1
        %s1097 = smul.addr %s1096, 128
        %s1098 = scalar_lea.vmem [#allocation11], %s1097
        // Predicated region
        $region73: #{tpu_custom_call.1} parent=47 // pred_check
          %p1099 = pneg %p232
        $region74: #{tpu_custom_call.1} parent=47 // pred_check_branch
          %1101 = sbr.rel (%p1099) target = $region76
        $region75: #{tpu_custom_call.1} parent=47 // pred_region
          %s1102 = smul.u32 16, %s32
          %s1104 = ssub.s32 2048, 2048
          %1105 = vsyncadd %s1095, %s1104
          %s1106 = smul.addr %s1102, 128
          %s1107 = scalar_lea.hbm %s7, %s1106
          %s1108 = sshll.u32 %s1098, 4
          %s1109 = int_to_ptr.vmem [resolvable:$true] %s1108
          %1114 = dma.vmem_to_hbm [thread:$0]  %s1109, 2048, %s1107, %s1095, 128, 128, 8
        $region76: #{tpu_custom_call.1} parent=47 // pred_fallthru
          _
      $region48: #{tpu_custom_call.1} parent=5 // pred_fallthru
        _
      %p1115 = scmp.le.s32.totalorder 2, %s23
      // Predicated region
      $region77: #{tpu_custom_call.1} parent=5 // pred_check
        %p1116 = pneg %p1115
      $region78: #{tpu_custom_call.1} parent=5 // pred_check_branch
        %1118 = sbr.rel (%p1116) target = $region80
      $region79: #{tpu_custom_call.1} parent=5 // pred_region
        %s1119 = ssub.s32 %s23, 2
        // Predicated region
        $region81: #{tpu_custom_call.1} parent=79 // pred_check
          %p1120 = pneg %p238
        $region82: #{tpu_custom_call.1} parent=79 // pred_check_branch
          %1122 = sbr.rel (%p1120) target = $region84
        $region83: #{tpu_custom_call.1} parent=79 // pred_region
          %s1123 = sand.u32 %s223, 1
          %s1124 = scalar_lea.sflag [#allocation5], %s1123
          %s1125 = sand.u32 %s223, 1
          %s1126 = smul.addr %s1125, 128
          %s1127 = scalar_lea.vmem [#allocation11], %s1126
          %1128 = dma.done %s1124, 2048
        $region84: #{tpu_custom_call.1} parent=79 // pred_fallthru
          _
      $region80: #{tpu_custom_call.1} parent=5 // pred_fallthru
        _
    $region6: #{tpu_custom_call.1} parent=1 // loop_footer
      %s27 = sadd.s32 1, %s23
    $region7: #{tpu_custom_call.1} parent=1 // loop_footer_branch
      %22 = sbr.rel target = $region3
    $region8: #{tpu_custom_call.1} parent=1 // loop_exit
      _
    %1129 = vsyncpa [#allocation4], 1
    %s1130 = scalar_lea.sflag [#allocation4], 1
    %1131 = vsyncpa %s1130, 1
    %1132 = vsyncpa [#allocation7], 1
    %s1133 = scalar_lea.sflag [#allocation7], 1
    %1134 = vsyncpa %s1133, 1
    %1135 = vsyncpa [#allocation10], 1
    %1136 = vsyncpa [#allocation5], 1
    %s1137 = scalar_lea.sflag [#allocation5], 1
    %1138 = vsyncpa %s1137, 1

</llo_original>
